<compile_context>
chip_gen: v7x
topology: tpu7x:2x2x1
jax: 0.10.0
libtpu: 0.0.40
codegen_flags: <defaults>
</compile_context>

<pallas_src>
import functools

import numpy as np
import jax
import jax.numpy as jnp
from jax.experimental import pallas as pl
from jax.experimental.pallas import tpu as pltpu


# -----------------------------------------------------------------------------
# Fused Pallas kernel: chain of matmul + bias (+ LeakyReLU) layers, all in VMEM
# -----------------------------------------------------------------------------
def _fused_encoder_kernel(*refs, num_layers, alpha, activate_last):
    """refs = (x_ref, w0_ref, b0_ref, ..., w{L-1}_ref, b{L-1}_ref, o_ref)."""
    x_ref = refs[0]
    o_ref = refs[-1]

    h = x_ref[...]                                   # (bm, feat_in) f32
    for l in range(num_layers):
        w_ref = refs[1 + 2 * l]                      # bf16 weights
        b_ref = refs[2 + 2 * l]                      # (1, N) f32 bias
        acc = jnp.dot(h.astype(jnp.bfloat16), w_ref[...],
                      preferred_element_type=jnp.float32)
        acc = acc + b_ref[...]                       # f32 epilogue
        if l < num_layers - 1 or activate_last:
            acc = jnp.where(acc >= 0.0, acc, alpha * acc)   # LeakyReLU (f32)
        h = acc
    o_ref[...] = h.astype(o_ref.dtype)               # single lane-dense store


def conv_encoder_forward(packed, x_nchw, *, alpha):
    """Fused forward: returns (mu, logvar)."""
    layers = packed["layers"]
    N = x_nchw.shape[0]
    # NCHW flatten; first-layer cin == 1 so this equals (h, w, c) row order.
    x2d = x_nchw.reshape(N, -1)
    feat_in = x2d.shape[1]
    out_dim = layers[-1][0].shape[1]                 # 2 * hidden_size

    # Batch tiling: full batch if small, otherwise tile M in multiples of 8
    # and shard blocks across TensorCores ("parallel").
    if N % 8 == 0:
        bm = min(N, 128)
        while N % bm:
            bm -= 8
    else:
        bm = N
    grid = (N // bm,)

    in_specs = [pl.BlockSpec((bm, feat_in), lambda i: (i, 0))]
    operands = [x2d]
    flops = 0
    bytes_accessed = x2d.size * x2d.dtype.itemsize + N * out_dim * 4
    for w, b in layers:
        in_specs.append(pl.BlockSpec(w.shape, lambda i: (0, 0)))
        in_specs.append(pl.BlockSpec(b.shape, lambda i: (0, 0)))
        operands.extend([w, b])
        flops += 2 * N * w.shape[0] * w.shape[1]
        bytes_accessed += w.size * w.dtype.itemsize + b.size * b.dtype.itemsize

    kernel = functools.partial(_fused_encoder_kernel, num_layers=len(layers),
                               alpha=alpha, activate_last=False)
    out = pl.pallas_call(
        kernel,
        out_shape=jax.ShapeDtypeStruct((N, out_dim), jnp.float32),
        grid=grid,
        in_specs=in_specs,
        out_specs=pl.BlockSpec((bm, out_dim), lambda i: (i, 0)),
        compiler_params=pltpu.CompilerParams(
            dimension_semantics=("parallel",)),
        cost_estimate=pl.CostEstimate(flops=flops, transcendentals=0,
                                      bytes_accessed=bytes_accessed),
    )(*operands)

    hid = out_dim // 2
    return out[:, :hid], out[:, hid:]


# -----------------------------------------------------------------------------
# One-time parameter packing (outside the hot path): conv -> dense matrix,
# linear row-permutation, fc1/fc2 concat, bf16 operand cast.
# -----------------------------------------------------------------------------
def build_conv_matrix(w, b, in_h, in_w, stride, pad):
    """Lower Conv2d(weight (kh,kw,cin,cout)) on an (in_h,in_w,cin) map flattened
    in (h, w, c) order to:  out_flat = in_flat @ M + b_rep, with out_flat in
    (h, w, c) order. Zero padding is baked in by omitting out-of-range taps."""
    kh, kw, cin, cout = w.shape
    out_h = (in_h + 2 * pad - kh) // stride + 1
    out_w = (in_w + 2 * pad - kw) // stride + 1
    M = np.zeros((in_h * in_w * cin, out_h * out_w * cout), np.float32)
    w_np = np.asarray(w, np.float32)
    for oh in range(out_h):
        for ow in range(out_w):
            col = (oh * out_w + ow) * cout
            for i in range(kh):
                ih = oh * stride + i - pad
                if ih < 0 or ih >= in_h:
                    continue
                for j in range(kw):
                    iw = ow * stride + j - pad
                    if iw < 0 or iw >= in_w:
                        continue
                    for ci in range(cin):
                        row = (ih * in_w + iw) * cin + ci
                        M[row, col:col + cout] = w_np[i, j, ci, :]
    b_rep = np.tile(np.asarray(b, np.float32), out_h * out_w)
    return M, b_rep, out_h, out_w


def pack_params(params, config, in_h, in_w):
    h, w = in_h, in_w
    cin = 1
    mats, biases = [], []
    for lvl in range(config.nb_levels):
        k = config.encoder_kernel_sizes[lvl]
        s = config.encoder_strides[lvl]
        pad = int(np.ceil(k / 2)) - 1
        wt = np.asarray(params[f"conv{lvl}_w"], np.float32)   # (kh,kw,cin,cout)
        bt = np.asarray(params[f"conv{lvl}_b"], np.float32)
        M, b_rep, h, w = build_conv_matrix(wt, bt, h, w, s, pad)
        mats.append((M, b_rep))
        cin = wt.shape[-1]
    cout_last = cin
    assert cout_last * h * w == config.nb_encoder_units[-1] * 3 * 3, \
        "spatial sizing must match the linear layer's in_features"

    # linear expects PyTorch flatten order (c, h, w); permute its rows to our
    # (h, w, c) feature order so no in-kernel transpose is ever needed.
    lin_w = np.asarray(params["linear_w"], np.float32)        # (C*H*W, 32)
    perm = np.array([c * h * w + hh * w + ww
                     for hh in range(h) for ww in range(w)
                     for c in range(cout_last)], np.int64)
    lin_w_hwc = lin_w[perm]

    # fused mu||logvar head
    head_w = np.concatenate([np.asarray(params["fc1_w"], np.float32),
                             np.asarray(params["fc2_w"], np.float32)], axis=1)
    head_b = np.concatenate([np.asarray(params["fc1_b"], np.float32),
                             np.asarray(params["fc2_b"], np.float32)])

    def as_layer(W, b):
        return (jnp.asarray(W, jnp.bfloat16),
                jnp.asarray(b, jnp.float32).reshape(1, -1))

    layers = [as_layer(M, b_rep) for (M, b_rep) in mats]
    layers.append(as_layer(lin_w_hwc, np.asarray(params["linear_b"], np.float32)))
    layers.append(as_layer(head_w, head_b))
    # TODO(synk): training-mode Dropout (pltpu.prng_random_bits mask) not
    # implemented; eval semantics (identity) are used, matching module.eval().
    return {"layers": layers}


# -----------------------------------------------------------------------------
# Config, synthetic init, pure-JAX reference (PyTorch semantics)
# -----------------------------------------------------------------------------
class Config:
    nb_levels = 2
    nb_encoder_units = [4, 8]
    encoder_kernel_sizes = [4, 4]
    encoder_strides = [2, 2]
    leaky_relu_alpha = 0.2
    dropout = 0.0
    hidden_size = 16


def init_params(config, key):
    params = {}
    in_ch = [1] + config.nb_encoder_units
    keys = jax.random.split(key, 2 * config.nb_levels + 6)
    ki = 0
    for lvl in range(config.nb_levels):
        k = config.encoder_kernel_sizes[lvl]
        cin, cout = in_ch[lvl], in_ch[lvl + 1]
        scale = 1.0 / np.sqrt(cin * k * k)
        params[f"conv{lvl}_w"] = jax.random.uniform(
            keys[ki], (k, k, cin, cout), jnp.float32, -scale, scale); ki += 1
        params[f"conv{lvl}_b"] = jax.random.uniform(
            keys[ki], (cout,), jnp.float32, -scale, scale); ki += 1

    lin_in = config.nb_encoder_units[-1] * 3 * 3
    for name, (din, dout) in (("linear", (lin_in, 32)),
                              ("fc1", (32, config.hidden_size)),
                              ("fc2", (32, config.hidden_size))):
        scale = 1.0 / np.sqrt(din)
        params[f"{name}_w"] = jax.random.uniform(
            keys[ki], (din, dout), jnp.float32, -scale, scale); ki += 1
        params[f"{name}_b"] = jax.random.uniform(
            keys[ki], (dout,), jnp.float32, -scale, scale); ki += 1
    return params


def reference_forward(params, x_nchw, config):
    """Pure-JAX reference following the PyTorch module exactly (f32)."""
    alpha = config.leaky_relu_alpha
    x = x_nchw
    for lvl in range(config.nb_levels):
        k = config.encoder_kernel_sizes[lvl]
        s = config.encoder_strides[lvl]
        pad = int(np.ceil(k / 2)) - 1
        w = jnp.transpose(params[f"conv{lvl}_w"], (3, 2, 0, 1))   # -> OIHW
        x = jax.lax.conv_general_dilated(
            x, w, window_strides=(s, s), padding=[(pad, pad), (pad, pad)],
            dimension_numbers=("NCHW", "OIHW", "NCHW"))
        x = x + params[f"conv{lvl}_b"][None, :, None, None]
        x = jnp.where(x >= 0, x, alpha * x)                       # Dropout = id
    x = x.reshape(x.shape[0], -1)                                  # (C,H,W) flat
    x = x @ params["linear_w"] + params["linear_b"]
    x = jnp.where(x >= 0, x, alpha * x)
    mu = x @ params["fc1_w"] + params["fc1_b"]
    logvar = x @ params["fc2_w"] + params["fc2_b"]
    return mu, logvar


if __name__ == "__main__":
    cfg = Config()
    key = jax.random.PRNGKey(0)
    k_params, k_x = jax.random.split(key)
    params = init_params(cfg, k_params)
    packed = pack_params(params, cfg, in_h=12, in_w=12)

    # batch=2, 1 channel, 12x12 spatial (two stride-2 convs end at 3x3).
    x = jax.random.normal(k_x, (2, 1, 12, 12), jnp.float32)

    fwd = jax.jit(functools.partial(conv_encoder_forward,
                                    alpha=cfg.leaky_relu_alpha))
    mu, logvar = fwd(packed, x)
    jax.block_until_ready((mu, logvar))

    # Correctness sanity check vs. the f32 pure-JAX reference (bf16 operands
    # in the kernel -> loose tolerance).
    mu_ref, logvar_ref = reference_forward(params, x, cfg)
    np.testing.assert_allclose(np.asarray(mu), np.asarray(mu_ref),
                               rtol=5e-2, atol=2e-2)
    np.testing.assert_allclose(np.asarray(logvar), np.asarray(logvar_ref),
                               rtol=5e-2, atol=2e-2)

    assert mu.shape == (2, cfg.hidden_size) and logvar.shape == (2, cfg.hidden_size)
    assert bool(jnp.all(jnp.isfinite(mu))) and bool(jnp.all(jnp.isfinite(logvar)))
    print("KERNEL_OK")
</pallas_src>

<mosaic_0001>
module attributes {stable_mosaic.version = 11 : i64} {
  func.func @_fused_encoder_kernel(%arg0: i32, %arg1: memref<2x144xf32, #tpu.memory_space<vmem>>, %arg2: memref<144x144xbf16, #tpu.memory_space<vmem>>, %arg3: memref<1x144xf32, #tpu.memory_space<vmem>>, %arg4: memref<144x72xbf16, #tpu.memory_space<vmem>>, %arg5: memref<1x72xf32, #tpu.memory_space<vmem>>, %arg6: memref<72x32xbf16, #tpu.memory_space<vmem>>, %arg7: memref<1x32xf32, #tpu.memory_space<vmem>>, %arg8: memref<32x32xbf16, #tpu.memory_space<vmem>>, %arg9: memref<1x32xf32, #tpu.memory_space<vmem>>, %arg10: memref<2x32xf32, #tpu.memory_space<vmem>>) attributes {dimension_semantics = [#tpu.dimension_semantics<parallel>], iteration_bounds = array<i64: 1>, scalar_prefetch = 0 : i64, scratch_operands = 0 : i64, tpu.core_type = #tpu.core_type<tc>, window_params = [{transform_indices = @transform_0, window_bounds = array<i64: 2, 144>}, {pipeline_mode = #tpu.pipeline_mode<synchronous>, transform_indices = @transform_1, window_bounds = array<i64: 144, 144>}, {pipeline_mode = #tpu.pipeline_mode<synchronous>, transform_indices = @transform_2, window_bounds = array<i64: 1, 144>}, {pipeline_mode = #tpu.pipeline_mode<synchronous>, transform_indices = @transform_3, window_bounds = array<i64: 144, 72>}, {pipeline_mode = #tpu.pipeline_mode<synchronous>, transform_indices = @transform_4, window_bounds = array<i64: 1, 72>}, {pipeline_mode = #tpu.pipeline_mode<synchronous>, transform_indices = @transform_5, window_bounds = array<i64: 72, 32>}, {pipeline_mode = #tpu.pipeline_mode<synchronous>, transform_indices = @transform_6, window_bounds = array<i64: 1, 32>}, {pipeline_mode = #tpu.pipeline_mode<synchronous>, transform_indices = @transform_7, window_bounds = array<i64: 32, 32>}, {pipeline_mode = #tpu.pipeline_mode<synchronous>, transform_indices = @transform_8, window_bounds = array<i64: 1, 32>}, {transform_indices = @transform_9, window_bounds = array<i64: 2, 32>}]} {
    %c0 = arith.constant 0 : index
    %c0_0 = arith.constant 0 : index
    %0 = vector.load %arg1[%c0, %c0_0] : memref<2x144xf32, #tpu.memory_space<vmem>>, vector<2x144xf32>
    %1 = arith.truncf %0 : vector<2x144xf32> to vector<2x144xbf16>
    %c0_1 = arith.constant 0 : index
    %c0_2 = arith.constant 0 : index
    %2 = vector.load %arg2[%c0_1, %c0_2] : memref<144x144xbf16, #tpu.memory_space<vmem>>, vector<144x144xbf16>
    %cst = arith.constant dense<0.000000e+00> : vector<2x144xf32>
    %3 = tpu.matmul %1, %2, %cst {dimension_numbers = #tpu.dot_dimension_numbers<[1], [0], [0], [1], [0, 0, 1, 1], [], []>} : vector<2x144xbf16>, vector<144x144xbf16>, vector<2x144xf32> -> vector<2x144xf32>
    %c0_3 = arith.constant 0 : index
    %c0_4 = arith.constant 0 : index
    %4 = vector.load %arg3[%c0_3, %c0_4] : memref<1x144xf32, #tpu.memory_space<vmem>>, vector<1x144xf32>
    %5 = vector.broadcast %4 : vector<1x144xf32> to vector<2x144xf32>
    %6 = arith.addf %3, %5 : vector<2x144xf32>
    %cst_5 = arith.constant 0.000000e+00 : f32
    %7 = vector.broadcast %cst_5 : f32 to vector<2x144xf32>
    %8 = arith.cmpf oge, %6, %7 : vector<2x144xf32>
    %cst_6 = arith.constant 2.000000e-01 : f32
    %9 = vector.broadcast %cst_6 : f32 to vector<2x144xf32>
    %10 = arith.mulf %9, %6 : vector<2x144xf32>
    %11 = arith.select %8, %6, %10 : vector<2x144xi1>, vector<2x144xf32>
    %12 = arith.truncf %11 : vector<2x144xf32> to vector<2x144xbf16>
    %c0_7 = arith.constant 0 : index
    %c0_8 = arith.constant 0 : index
    %13 = vector.load %arg4[%c0_7, %c0_8] : memref<144x72xbf16, #tpu.memory_space<vmem>>, vector<144x72xbf16>
    %cst_9 = arith.constant dense<0.000000e+00> : vector<2x72xf32>
    %14 = tpu.matmul %12, %13, %cst_9 {dimension_numbers = #tpu.dot_dimension_numbers<[1], [0], [0], [1], [0, 0, 1, 1], [], []>} : vector<2x144xbf16>, vector<144x72xbf16>, vector<2x72xf32> -> vector<2x72xf32>
    %c0_10 = arith.constant 0 : index
    %c0_11 = arith.constant 0 : index
    %15 = vector.load %arg5[%c0_10, %c0_11] : memref<1x72xf32, #tpu.memory_space<vmem>>, vector<1x72xf32>
    %16 = vector.broadcast %15 : vector<1x72xf32> to vector<2x72xf32>
    %17 = arith.addf %14, %16 : vector<2x72xf32>
    %cst_12 = arith.constant 0.000000e+00 : f32
    %18 = vector.broadcast %cst_12 : f32 to vector<2x72xf32>
    %19 = arith.cmpf oge, %17, %18 : vector<2x72xf32>
    %cst_13 = arith.constant 2.000000e-01 : f32
    %20 = vector.broadcast %cst_13 : f32 to vector<2x72xf32>
    %21 = arith.mulf %20, %17 : vector<2x72xf32>
    %22 = arith.select %19, %17, %21 : vector<2x72xi1>, vector<2x72xf32>
    %23 = arith.truncf %22 : vector<2x72xf32> to vector<2x72xbf16>
    %c0_14 = arith.constant 0 : index
    %c0_15 = arith.constant 0 : index
    %24 = vector.load %arg6[%c0_14, %c0_15] : memref<72x32xbf16, #tpu.memory_space<vmem>>, vector<72x32xbf16>
    %cst_16 = arith.constant dense<0.000000e+00> : vector<2x32xf32>
    %25 = tpu.matmul %23, %24, %cst_16 {dimension_numbers = #tpu.dot_dimension_numbers<[1], [0], [0], [1], [0, 0, 1, 1], [], []>} : vector<2x72xbf16>, vector<72x32xbf16>, vector<2x32xf32> -> vector<2x32xf32>
    %c0_17 = arith.constant 0 : index
    %c0_18 = arith.constant 0 : index
    %26 = vector.load %arg7[%c0_17, %c0_18] : memref<1x32xf32, #tpu.memory_space<vmem>>, vector<1x32xf32>
    %27 = vector.broadcast %26 : vector<1x32xf32> to vector<2x32xf32>
    %28 = arith.addf %25, %27 : vector<2x32xf32>
    %cst_19 = arith.constant 0.000000e+00 : f32
    %29 = vector.broadcast %cst_19 : f32 to vector<2x32xf32>
    %30 = arith.cmpf oge, %28, %29 : vector<2x32xf32>
    %cst_20 = arith.constant 2.000000e-01 : f32
    %31 = vector.broadcast %cst_20 : f32 to vector<2x32xf32>
    %32 = arith.mulf %31, %28 : vector<2x32xf32>
    %33 = arith.select %30, %28, %32 : vector<2x32xi1>, vector<2x32xf32>
    %34 = arith.truncf %33 : vector<2x32xf32> to vector<2x32xbf16>
    %c0_21 = arith.constant 0 : index
    %c0_22 = arith.constant 0 : index
    %35 = vector.load %arg8[%c0_21, %c0_22] : memref<32x32xbf16, #tpu.memory_space<vmem>>, vector<32x32xbf16>
    %cst_23 = arith.constant dense<0.000000e+00> : vector<2x32xf32>
    %36 = tpu.matmul %34, %35, %cst_23 {dimension_numbers = #tpu.dot_dimension_numbers<[1], [0], [0], [1], [0, 0, 1, 1], [], []>} : vector<2x32xbf16>, vector<32x32xbf16>, vector<2x32xf32> -> vector<2x32xf32>
    %c0_24 = arith.constant 0 : index
    %c0_25 = arith.constant 0 : index
    %37 = vector.load %arg9[%c0_24, %c0_25] : memref<1x32xf32, #tpu.memory_space<vmem>>, vector<1x32xf32>
    %38 = vector.broadcast %37 : vector<1x32xf32> to vector<2x32xf32>
    %39 = arith.addf %36, %38 : vector<2x32xf32>
    %c0_26 = arith.constant 0 : index
    %c0_27 = arith.constant 0 : index
    %40 = vector.load %arg10[%c0_26, %c0_27] : memref<2x32xf32, #tpu.memory_space<vmem>>, vector<2x32xf32>
    tpu.vector_store %arg10[%c0_26, %c0_27], %39 {strides = array<i32>} : memref<2x32xf32, #tpu.memory_space<vmem>>, vector<2x32xf32>,
    return
  }
  func.func @transform_0(%arg0: i32) -> (i32, i32) {
    %c0_i32 = arith.constant 0 : i32
    %c0_i32_0 = arith.constant 0 : i32
    return %arg0, %c0_i32 : i32, i32
  }
  func.func @transform_1(%arg0: i32) -> (i32, i32) {
    %c0_i32 = arith.constant 0 : i32
    %c0_i32_0 = arith.constant 0 : i32
    %c0_i32_1 = arith.constant 0 : i32
    return %c0_i32, %c0_i32_0 : i32, i32
  }
  func.func @transform_2(%arg0: i32) -> (i32, i32) {
    %c0_i32 = arith.constant 0 : i32
    %c0_i32_0 = arith.constant 0 : i32
    %c0_i32_1 = arith.constant 0 : i32
    return %c0_i32, %c0_i32_0 : i32, i32
  }
  func.func @transform_3(%arg0: i32) -> (i32, i32) {
    %c0_i32 = arith.constant 0 : i32
    %c0_i32_0 = arith.constant 0 : i32
    %c0_i32_1 = arith.constant 0 : i32
    return %c0_i32, %c0_i32_0 : i32, i32
  }
  func.func @transform_4(%arg0: i32) -> (i32, i32) {
    %c0_i32 = arith.constant 0 : i32
    %c0_i32_0 = arith.constant 0 : i32
    %c0_i32_1 = arith.constant 0 : i32
    return %c0_i32, %c0_i32_0 : i32, i32
  }
  func.func @transform_5(%arg0: i32) -> (i32, i32) {
    %c0_i32 = arith.constant 0 : i32
    %c0_i32_0 = arith.constant 0 : i32
    %c0_i32_1 = arith.constant 0 : i32
    return %c0_i32, %c0_i32_0 : i32, i32
  }
  func.func @transform_6(%arg0: i32) -> (i32, i32) {
    %c0_i32 = arith.constant 0 : i32
    %c0_i32_0 = arith.constant 0 : i32
    %c0_i32_1 = arith.constant 0 : i32
    return %c0_i32, %c0_i32_0 : i32, i32
  }
  func.func @transform_7(%arg0: i32) -> (i32, i32) {
    %c0_i32 = arith.constant 0 : i32
    %c0_i32_0 = arith.constant 0 : i32
    %c0_i32_1 = arith.constant 0 : i32
    return %c0_i32, %c0_i32_0 : i32, i32
  }
  func.func @transform_8(%arg0: i32) -> (i32, i32) {
    %c0_i32 = arith.constant 0 : i32
    %c0_i32_0 = arith.constant 0 : i32
    %c0_i32_1 = arith.constant 0 : i32
    return %c0_i32, %c0_i32_0 : i32, i32
  }
  func.func @transform_9(%arg0: i32) -> (i32, i32) {
    %c0_i32 = arith.constant 0 : i32
    %c0_i32_0 = arith.constant 0 : i32
    return %arg0, %c0_i32 : i32, i32
  }
}

</mosaic_0001>

<llo_original>
// kernel: conv_encoder_forward.1
$region0: #{conv_encoder_forward.1}
  #allocation0 [shape = 'u32[]', space=smem, size = 0x4, offset = 0x4, fixed_abs, tag = 'smem constant byte address 0x4 - core index']
  #allocation1 [shape = 'u32[144,128]{1,0:T(1,128)}', space=vmem, size = 0x12000, scoped, tag = 'internal scratch']
  %s0 = inlined_call_operand.vmem [shape: f32[2,144], index: 0, kind: input, shape index: {}]
  %s1 = inlined_call_operand.vmem [shape: bf16[144,144], index: 1, kind: input, shape index: {}]
  %s2 = inlined_call_operand.vmem [shape: f32[1,144], index: 2, kind: input, shape index: {}]
  %s3 = inlined_call_operand.hbm [shape: bf16[144,72], index: 3, kind: input, shape index: {}]
  %s4 = inlined_call_operand.vmem [shape: f32[1,72], index: 4, kind: input, shape index: {}]
  %s5 = inlined_call_operand.vmem [shape: bf16[72,32], index: 5, kind: input, shape index: {}]
  %s6 = inlined_call_operand.vmem [shape: f32[1,32], index: 6, kind: input, shape index: {}]
  %s7 = inlined_call_operand.hbm [shape: bf16[32,32], index: 7, kind: input, shape index: {}]
  %s8 = inlined_call_operand.vmem [shape: f32[1,32], index: 8, kind: input, shape index: {}]
  %s9 = inlined_call_operand.vmem [shape: f32[2,32], index: 9, kind: output, shape index: {}]
  %s10 = sld [smem:[#allocation0]]
  $region54: #{conv_encoder_forward.1} parent=0
    _
  %s12 = ssub.s32 1, %s10
  %s13 = scalar_select 0, %s12, %s10
  $region1: #{conv_encoder_forward.1} parent=0
    #allocation2 [shape = 'u8[36864]{0}', space=vmem, size = 0x9000, scoped, tag = 'input window, operand 3, single buffered']
    #allocation3 [shape = 's32[1]{0}', space=sflag, size = 0x4, scoped, tag = 'scoped memory for conv_encoder_forward.1']
    #allocation4 [shape = 'u8[8192]{0}', space=vmem, size = 0x2000, scoped, tag = 'input window, operand 7, single buffered']
    #allocation5 [shape = 's32[1]{0}', space=sflag, size = 0x4, scoped, tag = 'scoped memory for conv_encoder_forward.1']
    %14 = vsyncpa [#allocation3], 0
    %15 = vsyncpa [#allocation5], 0
    // Predicated region
    $region2: #{conv_encoder_forward.1} parent=1 // pred_check
      _
    $region3: #{conv_encoder_forward.1} parent=1 // pred_check_branch
      %17 = sbr.rel (0) target = $region5
    $region4: #{conv_encoder_forward.1} parent=1 // pred_region
      _
    $region5: #{conv_encoder_forward.1} parent=1 // pred_fallthru
      _
    // Predicated region
    $region6: #{conv_encoder_forward.1} parent=1 // pred_check
      _
    $region7: #{conv_encoder_forward.1} parent=1 // pred_check_branch
      %19 = sbr.rel (0) target = $region9
    $region8: #{conv_encoder_forward.1} parent=1 // pred_region
      _
    $region9: #{conv_encoder_forward.1} parent=1 // pred_fallthru
      _
    // Predicated region
    $region10: #{conv_encoder_forward.1} parent=1 // pred_check
      _
    $region11: #{conv_encoder_forward.1} parent=1 // pred_check_branch
      %21 = sbr.rel (0) target = $region13
    $region12: #{conv_encoder_forward.1} parent=1 // pred_region
      _
    $region13: #{conv_encoder_forward.1} parent=1 // pred_fallthru
      _
    // Predicated region
    $region14: #{conv_encoder_forward.1} parent=1 // pred_check
      _
    $region15: #{conv_encoder_forward.1} parent=1 // pred_check_branch
      %23 = sbr.rel (0) target = $region17
    $region16: #{conv_encoder_forward.1} parent=1 // pred_region
      %s25 = ssub.s32 1152, 1152
      %26 = vsyncadd [#allocation3], %s25
      %s27 = sshll.u32 [#allocation2], 4
      %s28 = int_to_ptr.vmem [resolvable:$true] %s27
      %33 = dma.hbm_to_vmem [thread:$0]  %s3, 1152, %s28, [#allocation3], 64, 64, 4
    $region17: #{conv_encoder_forward.1} parent=1 // pred_fallthru
      _
    // Predicated region
    $region18: #{conv_encoder_forward.1} parent=1 // pred_check
      _
    $region19: #{conv_encoder_forward.1} parent=1 // pred_check_branch
      %35 = sbr.rel (0) target = $region21
    $region20: #{conv_encoder_forward.1} parent=1 // pred_region
      _
    $region21: #{conv_encoder_forward.1} parent=1 // pred_fallthru
      _
    // Predicated region
    $region22: #{conv_encoder_forward.1} parent=1 // pred_check
      _
    $region23: #{conv_encoder_forward.1} parent=1 // pred_check_branch
      %37 = sbr.rel (0) target = $region25
    $region24: #{conv_encoder_forward.1} parent=1 // pred_region
      _
    $region25: #{conv_encoder_forward.1} parent=1 // pred_fallthru
      _
    // Predicated region
    $region26: #{conv_encoder_forward.1} parent=1 // pred_check
      _
    $region27: #{conv_encoder_forward.1} parent=1 // pred_check_branch
      %39 = sbr.rel (0) target = $region29
    $region28: #{conv_encoder_forward.1} parent=1 // pred_region
      _
    $region29: #{conv_encoder_forward.1} parent=1 // pred_fallthru
      _
    // Predicated region
    $region30: #{conv_encoder_forward.1} parent=1 // pred_check
      _
    $region31: #{conv_encoder_forward.1} parent=1 // pred_check_branch
      %41 = sbr.rel (0) target = $region33
    $region32: #{conv_encoder_forward.1} parent=1 // pred_region
      %s43 = ssub.s32 256, 256
      %44 = vsyncadd [#allocation5], %s43
      %s45 = sshll.u32 [#allocation4], 4
      %s46 = int_to_ptr.vmem [resolvable:$true] %s45
      %51 = dma.hbm_to_vmem [thread:$0]  %s7, 256, %s46, [#allocation5], 64, 64, 4
    $region33: #{conv_encoder_forward.1} parent=1 // pred_fallthru
      _
    // Predicated region
    $region34: #{conv_encoder_forward.1} parent=1 // pred_check
      _
    $region35: #{conv_encoder_forward.1} parent=1 // pred_check_branch
      %53 = sbr.rel (0) target = $region37
    $region36: #{conv_encoder_forward.1} parent=1 // pred_region
      _
    $region37: #{conv_encoder_forward.1} parent=1 // pred_fallthru
      _
    // Predicated region
    $region38: #{conv_encoder_forward.1} parent=1 // pred_check
      _
    $region39: #{conv_encoder_forward.1} parent=1 // pred_check_branch
      %55 = sbr.rel (0) target = $region41
    $region40: #{conv_encoder_forward.1} parent=1 // pred_region
      %56 = dma.done [#allocation3], 1152
    $region41: #{conv_encoder_forward.1} parent=1 // pred_fallthru
      _
    // Predicated region
    $region42: #{conv_encoder_forward.1} parent=1 // pred_check
      _
    $region43: #{conv_encoder_forward.1} parent=1 // pred_check_branch
      %58 = sbr.rel (0) target = $region45
    $region44: #{conv_encoder_forward.1} parent=1 // pred_region
      %59 = dma.done [#allocation5], 256
    $region45: #{conv_encoder_forward.1} parent=1 // pred_fallthru
      _
    %v61 = vld [vmem:[%s0] sm:$0xf]
    %v64 = vunpack.c.l.s4 1983009808
    %v65 = vunpack.c.0.s8 %v64
    %v66 = vlaneseq
    %v67 = vshrl.u32 %v66, 7
    %v68 = vsub.s32 %v65, %v67
    %v69 = vrot.slane %v61, %v68
    %v70 = vcombine.high %v69, %v69
    %v73 = vpack.c.bf16 %v69, %v69
    %v74 = vpack.c.bf16 %v70, %v70
    %v75 = vld [vmem:[%s1] sm:$0xff]
    %v76 = vld [vmem:[%s1 + $0x8] sm:$0xff]
    %v77 = vld [vmem:[%s1 + $0x10] sm:$0xff]
    %v78 = vld [vmem:[%s1 + $0x18] sm:$0xff]
    %v79 = vld [vmem:[%s1 + $0x20] sm:$0xff]
    %v80 = vld [vmem:[%s1 + $0x28] sm:$0xff]
    %v81 = vld [vmem:[%s1 + $0x30] sm:$0xff]
    %v82 = vld [vmem:[%s1 + $0x38] sm:$0xff]
    %v83 = vld [vmem:[%s1 + $0x40] sm:$0xff]
    %v84 = vld [vmem:[%s1 + $0x48] sm:$0xff]
    %v85 = vld [vmem:[%s1 + $0x50] sm:$0xff]
    %v86 = vld [vmem:[%s1 + $0x58] sm:$0xff]
    %v87 = vld [vmem:[%s1 + $0x60] sm:$0xff]
    %v88 = vld [vmem:[%s1 + $0x68] sm:$0xff]
    %v89 = vld [vmem:[%s1 + $0x70] sm:$0xff]
    %v90 = vld [vmem:[%s1 + $0x78] sm:$0xff]
    %v91 = vld [vmem:[%s1 + $0x80] sm:$0xff]
    %v92 = vld [vmem:[%s1 + $0x88] sm:$0xff]
    %v93 = vld [vmem:[%s2] sm:$0x3]
    %v95 = vlaneseq
    %v96 = vshrl.u32 %v95, 7
    %v97 = vsub.s32 0, %v96
    %v98 = vrot.slane %v93, %v97
    %v99 = vlaneseq
    %v100 = vshrl.u32 %v99, 7
    %v101 = vsub.s32 1, %v100
    %v102 = vrot.slane %v93, %v101
    %v123 = vunpack.c.l.b16 %v75
    %v124 = vunpack.c.h.b16 %v75
    %v125 = vunpack.c.l.b16 %v76
    %v126 = vunpack.c.h.b16 %v76
    %v127 = vunpack.c.l.b16 %v77
    %v128 = vunpack.c.h.b16 %v77
    %v129 = vunpack.c.l.b16 %v78
    %v130 = vunpack.c.h.b16 %v78
    %v131 = vunpack.c.l.b16 %v79
    %v132 = vunpack.c.h.b16 %v79
    %v133 = vunpack.c.l.b16 %v80
    %v134 = vunpack.c.h.b16 %v80
    %v135 = vunpack.c.l.b16 %v81
    %v136 = vunpack.c.h.b16 %v81
    %v137 = vunpack.c.l.b16 %v82
    %v138 = vunpack.c.h.b16 %v82
    %v139 = vunpack.c.l.b16 %v83
    %v140 = vunpack.c.h.b16 %v83
    %v141 = vunpack.c.l.b16 %v84
    %v142 = vunpack.c.h.b16 %v84
    %v143 = vunpack.c.l.b16 %v85
    %v144 = vunpack.c.h.b16 %v85
    %v145 = vunpack.c.l.b16 %v86
    %v146 = vunpack.c.h.b16 %v86
    %v147 = vunpack.c.l.b16 %v87
    %v148 = vunpack.c.h.b16 %v87
    %v149 = vunpack.c.l.b16 %v88
    %v150 = vunpack.c.h.b16 %v88
    %v151 = vunpack.c.l.b16 %v89
    %v152 = vunpack.c.h.b16 %v89
    %v153 = vunpack.c.l.b16 %v90
    %v154 = vunpack.c.h.b16 %v90
    %v155 = vunpack.c.l.b16 %v91
    %v156 = vunpack.c.h.b16 %v91
    %v157 = vunpack.c.l.b16 %v92
    %v158 = vunpack.c.h.b16 %v92
    %v159 = vpack.c.b16 %v125, %v123
    %v160 = vpack.c.b16 %v126, %v124
    %v161 = vpack.c.b16 %v129, %v127
    %v162 = vpack.c.b16 %v130, %v128
    %v163 = vpack.c.b16 %v133, %v131
    %v164 = vpack.c.b16 %v134, %v132
    %v165 = vpack.c.b16 %v137, %v135
    %v166 = vpack.c.b16 %v138, %v136
    %v167 = vpack.c.b16 %v141, %v139
    %v168 = vpack.c.b16 %v142, %v140
    %v169 = vpack.c.b16 %v145, %v143
    %v170 = vpack.c.b16 %v146, %v144
    %v171 = vpack.c.b16 %v149, %v147
    %v172 = vpack.c.b16 %v150, %v148
    %v173 = vpack.c.b16 %v153, %v151
    %v174 = vpack.c.b16 %v154, %v152
    %v175 = vpack.c.b16 %v157, %v155
    %v176 = vpack.c.b16 %v158, %v156
    %vm195 = vcmask 130048
    %v197 = vsel %vm195, %v74, 0
    %199 = vmatprep.subr.bf16.mxu0 %v160
    %200 = vmatpush1.bf16.msra.mxu0 %v159
    %201 = vmatprep.subr.bf16.mxu0 %v162
    %202 = vmatpush1.bf16.msra.mxu0 %v161
    %203 = vmatprep.subr.bf16.mxu0 %v164
    %204 = vmatpush1.bf16.msra.mxu0 %v163
    %205 = vmatprep.subr.bf16.mxu0 %v166
    %206 = vmatpush1.bf16.msra.mxu0 %v165
    %207 = vmatprep.subr.bf16.mxu0 %v168
    %208 = vmatpush1.bf16.msra.mxu0 %v167
    %209 = vmatprep.subr.bf16.mxu0 %v170
    %210 = vmatpush1.bf16.msra.mxu0 %v169
    %211 = vmatprep.subr.bf16.mxu0 %v172
    %212 = vmatpush1.bf16.msra.mxu0 %v171
    %213 = vmatprep.subr.bf16.mxu0 %v174
    %214 = vmatpush1.bf16.msra.mxu0 %v173
    %215 = vmatprep.subr.bf16.mxu0 %v176
    %216 = vmatpush1.bf16.msra.mxu0 %v175
    %217 = vmatprep.subr.bf16.mxu0 0
    %218 = vmatpush1.bf16.msra.mxu0 0
    %219 = vmatprep.subr.bf16.mxu0 0
    %220 = vmatpush1.bf16.msra.mxu0 0
    %221 = vmatprep.subr.bf16.mxu0 0
    %222 = vmatpush1.bf16.msra.mxu0 0
    %223 = vmatprep.subr.bf16.mxu0 0
    %224 = vmatpush1.bf16.msra.mxu0 0
    %225 = vmatprep.subr.bf16.mxu0 0
    %226 = vmatpush1.bf16.msra.mxu0 0
    %227 = vmatprep.subr.bf16.mxu0 0
    %228 = vmatpush1.bf16.msra.mxu0 0
    %229 = vmatprep.subr.bf16.mxu0 0
    %230 = vmatpush1.bf16.msra.mxu0 0
    %231 = vmatprep.mubr.bf16.mxu0 %v197
    %232 = vmatmul.mubr.bf16.gmra.mrb[0].mxu0 %v73
    %v233 = vpop.f32.mrb[0].mxu0
    %v234 = vadd.f32 %v98, %v233
    %v235 = vpop.f32.mrb[0].mxu0
    %v236 = vadd.f32 %v102, %v235
    %v237 = vpop.f32.mrb[0].mxu0
    %v238 = vpop.f32.mrb[0].mxu0
    %239 = vdwg.mxu0
    %vm240 = vcmp.ge.f32.partialorder %v234, 0.0
    %vm241 = vcmp.ge.f32.partialorder %v236, 0.0
    %v242 = vmul.f32 %v234, 0.2
    %v243 = vmul.f32 %v236, 0.2
    %v244 = vsel %vm240, %v234, %v242
    %v245 = vsel %vm241, %v236, %v243
    %v246 = vpack.c.bf16 %v244, %v244
    %v247 = vpack.c.bf16 %v245, %v245
    %v248 = vld [vmem:[#allocation2] sm:$0xf]
    %v249 = vld [vmem:[#allocation2 + $0x4] sm:$0xf]
    %v250 = vld [vmem:[#allocation2 + $0x8] sm:$0xf]
    %v251 = vld [vmem:[#allocation2 + $0xc] sm:$0xf]
    %v252 = vld [vmem:[#allocation2 + $0x10] sm:$0xf]
    %v253 = vld [vmem:[#allocation2 + $0x14] sm:$0xf]
    %v254 = vld [vmem:[#allocation2 + $0x18] sm:$0xf]
    %v255 = vld [vmem:[#allocation2 + $0x1c] sm:$0xf]
    %v256 = vld [vmem:[#allocation2 + $0x20] sm:$0xf]
    %v257 = vld [vmem:[#allocation2 + $0x24] sm:$0xf]
    %v258 = vld [vmem:[#allocation2 + $0x28] sm:$0xf]
    %v259 = vld [vmem:[#allocation2 + $0x2c] sm:$0xf]
    %v260 = vld [vmem:[#allocation2 + $0x30] sm:$0xf]
    %v261 = vld [vmem:[#allocation2 + $0x34] sm:$0xf]
    %v262 = vld [vmem:[#allocation2 + $0x38] sm:$0xf]
    %v263 = vld [vmem:[#allocation2 + $0x3c] sm:$0xf]
    %v264 = vld [vmem:[#allocation2 + $0x40] sm:$0xf]
    %v265 = vld [vmem:[#allocation2 + $0x44] sm:$0xf]
    %v266 = vld [vmem:[%s4] sm:$0x1]
    %v268 = vlaneseq
    %v269 = vshrl.u32 %v268, 7
    %v270 = vsub.s32 0, %v269
    %v271 = vrot.slane %v266, %v270
    %v291 = vunpack.c.l.b16 %v248
    %v292 = vunpack.c.l.b16 %v249
    %v293 = vunpack.c.l.b16 %v250
    %v294 = vunpack.c.l.b16 %v251
    %v295 = vunpack.c.l.b16 %v252
    %v296 = vunpack.c.l.b16 %v253
    %v297 = vunpack.c.l.b16 %v254
    %v298 = vunpack.c.l.b16 %v255
    %v299 = vunpack.c.l.b16 %v256
    %v300 = vunpack.c.l.b16 %v257
    %v301 = vunpack.c.l.b16 %v258
    %v302 = vunpack.c.l.b16 %v259
    %v303 = vunpack.c.l.b16 %v260
    %v304 = vunpack.c.l.b16 %v261
    %v305 = vunpack.c.l.b16 %v262
    %v306 = vunpack.c.l.b16 %v263
    %v307 = vunpack.c.l.b16 %v264
    %v308 = vunpack.c.l.b16 %v265
    %v309 = vpack.c.b16 %v292, %v291
    %v310 = vpack.c.b16 %v294, %v293
    %v311 = vpack.c.b16 %v296, %v295
    %v312 = vpack.c.b16 %v298, %v297
    %v313 = vpack.c.b16 %v300, %v299
    %v314 = vpack.c.b16 %v302, %v301
    %v315 = vpack.c.b16 %v304, %v303
    %v316 = vpack.c.b16 %v306, %v305
    %v317 = vpack.c.b16 %v308, %v307
    %v328 = vsel %vm195, %v247, 0
    %330 = vmatprep.subr.bf16.mxu0 0
    %331 = vmatpush1.bf16.msra.mxu0 %v309
    %332 = vmatprep.subr.bf16.mxu0 0
    %333 = vmatpush1.bf16.msra.mxu0 %v310
    %334 = vmatprep.subr.bf16.mxu0 0
    %335 = vmatpush1.bf16.msra.mxu0 %v311
    %336 = vmatprep.subr.bf16.mxu0 0
    %337 = vmatpush1.bf16.msra.mxu0 %v312
    %338 = vmatprep.subr.bf16.mxu0 0
    %339 = vmatpush1.bf16.msra.mxu0 %v313
    %340 = vmatprep.subr.bf16.mxu0 0
    %341 = vmatpush1.bf16.msra.mxu0 %v314
    %342 = vmatprep.subr.bf16.mxu0 0
    %343 = vmatpush1.bf16.msra.mxu0 %v315
    %344 = vmatprep.subr.bf16.mxu0 0
    %345 = vmatpush1.bf16.msra.mxu0 %v316
    %346 = vmatprep.subr.bf16.mxu0 0
    %347 = vmatpush1.bf16.msra.mxu0 %v317
    %348 = vmatprep.subr.bf16.mxu0 0
    %349 = vmatpush1.bf16.msra.mxu0 0
    %350 = vmatprep.subr.bf16.mxu0 0
    %351 = vmatpush1.bf16.msra.mxu0 0
    %352 = vmatprep.subr.bf16.mxu0 0
    %353 = vmatpush1.bf16.msra.mxu0 0
    %354 = vmatprep.subr.bf16.mxu0 0
    %355 = vmatpush1.bf16.msra.mxu0 0
    %356 = vmatprep.subr.bf16.mxu0 0
    %357 = vmatpush1.bf16.msra.mxu0 0
    %358 = vmatprep.subr.bf16.mxu0 0
    %359 = vmatpush1.bf16.msra.mxu0 0
    %360 = vmatprep.subr.bf16.mxu0 0
    %361 = vmatpush1.bf16.msra.mxu0 0
    %362 = vmatprep.mubr.bf16.mxu0 %v328
    %363 = vmatmul.mubr.bf16.gmra.mrb[0].mxu0 %v246
    %v364 = vpop.f32.mrb[0].mxu0
    %v365 = vadd.f32 %v271, %v364
    %v366 = vpop.f32.mrb[0].mxu0
    %v367 = vpop.f32.mrb[0].mxu0
    %v368 = vpop.f32.mrb[0].mxu0
    %369 = vdwg.mxu0
    %vm370 = vcmp.ge.f32.partialorder %v365, 0.0
    %v371 = vmul.f32 %v365, 0.2
    %v372 = vsel %vm370, %v365, %v371
    %v373 = vpack.c.bf16 %v372, %v372
    %v374 = vld [vmem:[%s5] sm:$0xf]
    %v375 = vld [vmem:[%s5 + $0x4] sm:$0xf]
    %v376 = vld [vmem:[%s5 + $0x8] sm:$0xf]
    %v377 = vld [vmem:[%s5 + $0xc] sm:$0xf]
    %v378 = vld [vmem:[%s5 + $0x10] sm:$0xf]
    %v379 = vld [vmem:[%s5 + $0x14] sm:$0xf]
    %v380 = vld [vmem:[%s5 + $0x18] sm:$0xf]
    %v381 = vld [vmem:[%s5 + $0x1c] sm:$0xf]
    %v382 = vld [vmem:[%s5 + $0x20] sm:$0xf]
    %v383 = vld [vmem:[%s6] sm:$0x1]
    %v385 = vlaneseq
    %v386 = vshrl.u32 %v385, 7
    %v387 = vsub.s32 0, %v386
    %v388 = vrot.slane %v383, %v387
    %v399 = vunpack.c.l.b16 %v374
    %v400 = vunpack.c.l.b16 %v375
    %v401 = vunpack.c.l.b16 %v376
    %v402 = vunpack.c.l.b16 %v377
    %v403 = vunpack.c.l.b16 %v378
    %v404 = vunpack.c.l.b16 %v379
    %v405 = vunpack.c.l.b16 %v380
    %v406 = vunpack.c.l.b16 %v381
    %v407 = vunpack.c.l.b16 %v382
    %v408 = vpack.c.b16 %v400, %v399
    %v409 = vpack.c.b16 %v402, %v401
    %v410 = vpack.c.b16 %v404, %v403
    %v411 = vpack.c.b16 %v406, %v405
    %v412 = vpack.c.b16 %v407, %v407
    %vm417 = vcmask 588800
    %v419 = vsel %vm417, %v373, 0
    %vm421 = vcmask 1043456
    %v423 = vsel %vm421, %v412, 0
    %425 = vmatprep.subr.bf16.mxu0 0
    %426 = vmatpush1.bf16.msra.mxu0 %v408
    %427 = vmatprep.subr.bf16.mxu0 0
    %428 = vmatpush1.bf16.msra.mxu0 %v409
    %429 = vmatprep.subr.bf16.mxu0 0
    %430 = vmatpush1.bf16.msra.mxu0 %v410
    %431 = vmatprep.subr.bf16.mxu0 0
    %432 = vmatpush1.bf16.msra.mxu0 %v411
    %433 = vmatprep.subr.bf16.mxu0 0
    %434 = vmatpush1.bf16.msra.mxu0 %v423
    %435 = vmatprep.subr.bf16.mxu0 0
    %436 = vmatpush1.bf16.msra.mxu0 0
    %437 = vmatprep.subr.bf16.mxu0 0
    %438 = vmatpush1.bf16.msra.mxu0 0
    %439 = vmatprep.subr.bf16.mxu0 0
    %440 = vmatpush1.bf16.msra.mxu0 0
    %441 = vmatprep.subr.bf16.mxu0 0
    %442 = vmatpush1.bf16.msra.mxu0 0
    %443 = vmatprep.subr.bf16.mxu0 0
    %444 = vmatpush1.bf16.msra.mxu0 0
    %445 = vmatprep.subr.bf16.mxu0 0
    %446 = vmatpush1.bf16.msra.mxu0 0
    %447 = vmatprep.subr.bf16.mxu0 0
    %448 = vmatpush1.bf16.msra.mxu0 0
    %449 = vmatprep.subr.bf16.mxu0 0
    %450 = vmatpush1.bf16.msra.mxu0 0
    %451 = vmatprep.subr.bf16.mxu0 0
    %452 = vmatpush1.bf16.msra.mxu0 0
    %453 = vmatprep.subr.bf16.mxu0 0
    %454 = vmatpush1.bf16.msra.mxu0 0
    %455 = vmatprep.subr.bf16.mxu0 0
    %456 = vmatpush1.bf16.msra.mxu0 0
    %457 = vmatprep.mubr.bf16.mxu0 0
    %458 = vmatmul.mubr.bf16.gmra.mrb[0].mxu0 %v419
    %v459 = vpop.f32.mrb[0].mxu0
    %v460 = vadd.f32 %v388, %v459
    %v461 = vpop.f32.mrb[0].mxu0
    %v462 = vpop.f32.mrb[0].mxu0
    %v463 = vpop.f32.mrb[0].mxu0
    %464 = vdwg.mxu0
    %vm465 = vcmp.ge.f32.partialorder %v460, 0.0
    %v466 = vmul.f32 %v460, 0.2
    %v467 = vsel %vm465, %v460, %v466
    %v468 = vpack.c.bf16 %v467, %v467
    %v469 = vld [vmem:[#allocation4] sm:$0xf]
    %v470 = vld [vmem:[#allocation4 + $0x4] sm:$0xf]
    %v471 = vld [vmem:[#allocation4 + $0x8] sm:$0xf]
    %v472 = vld [vmem:[#allocation4 + $0xc] sm:$0xf]
    %v473 = vld [vmem:[%s8] sm:$0x1]
    %v475 = vlaneseq
    %v476 = vshrl.u32 %v475, 7
    %v477 = vsub.s32 0, %v476
    %v478 = vrot.slane %v473, %v477
    %v484 = vunpack.c.l.b16 %v469
    %v485 = vunpack.c.l.b16 %v470
    %v486 = vunpack.c.l.b16 %v471
    %v487 = vunpack.c.l.b16 %v472
    %v488 = vpack.c.b16 %v485, %v484
    %v489 = vpack.c.b16 %v487, %v486
    %vm492 = vcmask 261120
    %v494 = vsel %vm492, %v468, 0
    %496 = vmatprep.subr.bf16.mxu0 0
    %497 = vmatpush1.bf16.msra.mxu0 %v488
    %498 = vmatprep.subr.bf16.mxu0 0
    %499 = vmatpush1.bf16.msra.mxu0 %v489
    %500 = vmatprep.subr.bf16.mxu0 0
    %501 = vmatpush1.bf16.msra.mxu0 0
    %502 = vmatprep.subr.bf16.mxu0 0
    %503 = vmatpush1.bf16.msra.mxu0 0
    %504 = vmatprep.subr.bf16.mxu0 0
    %505 = vmatpush1.bf16.msra.mxu0 0
    %506 = vmatprep.subr.bf16.mxu0 0
    %507 = vmatpush1.bf16.msra.mxu0 0
    %508 = vmatprep.subr.bf16.mxu0 0
    %509 = vmatpush1.bf16.msra.mxu0 0
    %510 = vmatprep.subr.bf16.mxu0 0
    %511 = vmatpush1.bf16.msra.mxu0 0
    %512 = vmatprep.subr.bf16.mxu0 0
    %513 = vmatpush1.bf16.msra.mxu0 0
    %514 = vmatprep.subr.bf16.mxu0 0
    %515 = vmatpush1.bf16.msra.mxu0 0
    %516 = vmatprep.subr.bf16.mxu0 0
    %517 = vmatpush1.bf16.msra.mxu0 0
    %518 = vmatprep.subr.bf16.mxu0 0
    %519 = vmatpush1.bf16.msra.mxu0 0
    %520 = vmatprep.subr.bf16.mxu0 0
    %521 = vmatpush1.bf16.msra.mxu0 0
    %522 = vmatprep.subr.bf16.mxu0 0
    %523 = vmatpush1.bf16.msra.mxu0 0
    %524 = vmatprep.subr.bf16.mxu0 0
    %525 = vmatpush1.bf16.msra.mxu0 0
    %526 = vmatprep.subr.bf16.mxu0 0
    %527 = vmatpush1.bf16.msra.mxu0 0
    %528 = vmatprep.mubr.bf16.mxu0 0
    %529 = vmatmul.mubr.bf16.gmra.mrb[0].mxu0 %v494
    %v530 = vpop.f32.mrb[0].mxu0
    %v531 = vadd.f32 %v478, %v530
    %v532 = vpop.f32.mrb[0].mxu0
    %v533 = vpop.f32.mrb[0].mxu0
    %v534 = vpop.f32.mrb[0].mxu0
    %535 = vdwg.mxu0
    %vm536 = vcmask 254976
    %537 = vst.msk [vmem:[%s9] sm:$0x3] %vm536, %v531
    // Predicated region
    $region46: #{conv_encoder_forward.1} parent=1 // pred_check
      _
    $region47: #{conv_encoder_forward.1} parent=1 // pred_check_branch
      %539 = sbr.rel (0) target = $region49
    $region48: #{conv_encoder_forward.1} parent=1 // pred_region
      _
    $region49: #{conv_encoder_forward.1} parent=1 // pred_fallthru
      _
    // Predicated region
    $region50: #{conv_encoder_forward.1} parent=1 // pred_check
      _
    $region51: #{conv_encoder_forward.1} parent=1 // pred_check_branch
      %541 = sbr.rel (0) target = $region53
    $region52: #{conv_encoder_forward.1} parent=1 // pred_region
      _
    $region53: #{conv_encoder_forward.1} parent=1 // pred_fallthru
      _
    %542 = vsyncpa [#allocation3], 1
    %543 = vsyncpa [#allocation5], 1

</llo_original>
